<compile_context>
chip_gen: v7x
topology: tpu7x:2x2x1
jax: 0.10.0
libtpu: 0.0.40
codegen_flags: <defaults>
</compile_context>

<pallas_src>
import jax
import jax.numpy as jnp
from jax import lax
from jax.experimental import pallas as pl
from jax.experimental.pallas import tpu as pltpu

EPS_FOCAL = 1e-6
GAMMA = 1.0
LABEL_SMOOTHING = 0.1
IGNORE_INDEX = -100


def _round_down(x, m):
    return (x // m) * m


def _round_up(x, m):
    return ((x + m - 1) // m) * m


# ----------------------------- IC: multilabel focal loss -----------------------------

def _make_ic_kernel(*, gamma, eps, target_is_index):
    def kernel(x_ref, t_ref, out_ref):
        x = x_ref[...].astype(jnp.float32)                                  # (B, C_ic)
        if target_is_index:
            it = t_ref[...]                                                 # (B, 1) int32
            icls = lax.broadcasted_iota(jnp.int32, x.shape, 1)
            t = (icls == it).astype(jnp.float32)                            # in-kernel one-hot
        else:
            t = t_ref[...].astype(jnp.float32)                              # dense one/multi-hot
        log_sig = jnp.minimum(x, 0.0) - jnp.log1p(jnp.exp(-jnp.abs(x)))     # logsigmoid(x)
        soft = jax.nn.sigmoid(x) + eps
        focal_w = (1.0 - soft) if gamma == 1.0 else jnp.power(1.0 - soft, gamma)
        focal = -t * focal_w * log_sig
        # class_weights == ones -> per-example sum over classes; reduction='mean' over batch
        ic_loss = jnp.sum(focal) * (1.0 / x.shape[0])
        lane = lax.broadcasted_iota(jnp.int32, (8, 128), 1)
        sub = lax.broadcasted_iota(jnp.int32, (8, 128), 0)
        out_ref[...] = jnp.where((sub == 0) & (lane == 0), ic_loss, 0.0)
    return kernel


def _ic_focal_loss(ic_logits, ic_target):
    b_ic, c_ic = ic_logits.shape
    if ic_target.ndim < ic_logits.ndim:
        t_arr = ic_target.reshape(b_ic, 1).astype(jnp.int32)
        t_block = (b_ic, 1)
        is_index = True
    else:
        t_arr = ic_target
        t_block = (b_ic, c_ic)
        is_index = False
    kernel = _make_ic_kernel(gamma=GAMMA, eps=EPS_FOCAL, target_is_index=is_index)
    raw = pl.pallas_call(
        kernel,
        out_shape=jax.ShapeDtypeStruct((8, 128), jnp.float32),
        grid_spec=pltpu.PrefetchScalarGridSpec(
            num_scalar_prefetch=0,
            grid=(1,),
            in_specs=[pl.BlockSpec((b_ic, c_ic), lambda i: (0, 0)),
                      pl.BlockSpec(t_block, lambda i: (0, 0))],
            out_specs=pl.BlockSpec((8, 128), lambda i: (0, 0))),
        compiler_params=pltpu.CompilerParams(dimension_semantics=("arbitrary",)),
    )(ic_logits, t_arr)
    return raw[0, 0]


# --------------------- NER: label-smoothed CE, lane-packed fast path -----------------

def _make_ner_packed_kernel(*, n_rows, block_rows, c_ner, label_smoothing, ignore_index):
    tpr = 128 // c_ner                       # tokens per 128-lane row
    inv_c = 1.0 / float(c_ner)
    log2c = int(c_ner).bit_length() - 1

    def kernel(z_ref, t_ref, out_ref):
        pid = pl.program_id(0)
        z = z_ref[...].astype(jnp.float32)                                  # (R, 128) lane-dense
        tgt = t_ref[...]                                                    # (R, tpr) int32
        r = z.shape[0]

        lane = lax.broadcasted_iota(jnp.int32, (r, 128), 1)
        cls = jnp.bitwise_and(lane, c_ner - 1)                              # class id of each lane
        slot = jnp.right_shift(lane, log2c)                                 # token slot within row
        grow = pid * block_rows + lax.broadcasted_iota(jnp.int32, (r, 128), 0)
        in_bounds = grow < n_rows                                           # grid-overhang rows -> garbage

        # Expand per-token targets and per-token max across each token's C-lane
        # segment via per-slot masked full-width reductions (all ops stay 128-lane wide).
        texp = jnp.full((r, 128), ignore_index, jnp.int32)
        m = jnp.zeros((r, 128), jnp.float32)
        for j in range(tpr):
            in_slot = slot == j
            texp = jnp.where(in_slot, tgt[:, j:j + 1], texp)
            mj = jnp.max(jnp.where(in_slot, z, -jnp.inf), axis=-1, keepdims=True)
            m = jnp.where(in_slot, mj, m)

        e = jnp.exp(z - m)
        s = jnp.zeros((r, 128), jnp.float32)
        for j in range(tpr):
            in_slot = slot == j
            sj = jnp.sum(jnp.where(in_slot, e, 0.0), axis=-1, keepdims=True)
            s = jnp.where(in_slot, sj, s)
        lse = m + jnp.log(s)                                                # per-token lse (bcast on its lanes)

        valid = (texp != ignore_index) & in_bounds                          # validity of the owning token
        match = valid & (cls == texp)                                       # one-hot(target) lanes
        is_start = cls == 0                                                 # one lane per token

        # CE with label smoothing, folded into one masked pass over the tile:
        #   per_tok = lse - (1-ls)*z[target] - (ls/C)*sum_c z
        contrib = (jnp.where(is_start & valid, lse, 0.0)
                   - (1.0 - label_smoothing) * jnp.where(match, z, 0.0)
                   - (label_smoothing * inv_c) * jnp.where(valid, z, 0.0))
        ner_sum = jnp.sum(contrib)
        valid_cnt = jnp.sum(jnp.where(is_start & valid, 1.0, 0.0))

        l8 = lax.broadcasted_iota(jnp.int32, (8, 128), 1)
        s8 = lax.broadcasted_iota(jnp.int32, (8, 128), 0)
        first = s8 == 0
        out_ref[...] = jnp.where(first & (l8 == 0), ner_sum,
                                 jnp.where(first & (l8 == 1), valid_cnt, 0.0))
    return kernel


def _ner_ce_packed(ner_logits_2d, ner_target_flat, n_tokens, c_ner, block_rows=None):
    tpr = 128 // c_ner
    n_rows = n_tokens // tpr
    logits_p = ner_logits_2d.reshape(n_rows, 128)                           # zero-copy lane packing
    targets_p = ner_target_flat.reshape(n_rows, tpr).astype(jnp.int32)      # tpr targets per row

    itemsize = jnp.dtype(ner_logits_2d.dtype).itemsize
    rows_mult = 8 if itemsize >= 4 else (16 if itemsize == 2 else 32)
    # Padded VMEM bytes per block row: 2x logits buffers + 2x lane-padded int32
    # target buffers + ~12 full-width f32/int32 temporaries.
    per_row_bytes = 128 * (2 * itemsize + 2 * 4 + 12 * 4)
    if block_rows is None:
        r = (1 << 20) // (128 * itemsize)                 # ~1 MiB of packed logits per step
        r = min(r, (26 << 20) // per_row_bytes)           # keep padded footprint well under VMEM
    else:
        r = block_rows
    if n_rows > rows_mult:
        r = min(r, _round_up(pl.cdiv(n_rows, 2), rows_mult))   # >=2 steps -> both TCs on v7x
    r = max(rows_mult, _round_down(r, rows_mult))
    grid = pl.cdiv(n_rows, r)
    if grid <= 1:
        r = n_rows                                        # full-dim block is always legal
        grid = 1
    vmem_limit = int(min(40 << 20, max(16 << 20, int(1.3 * r * per_row_bytes))))

    kernel = _make_ner_packed_kernel(
        n_rows=n_rows, block_rows=r, c_ner=c_ner,
        label_smoothing=LABEL_SMOOTHING, ignore_index=IGNORE_INDEX)
    raw = pl.pallas_call(
        kernel,
        out_shape=jax.ShapeDtypeStruct((grid * 8, 128), jnp.float32),
        grid_spec=pltpu.PrefetchScalarGridSpec(
            num_scalar_prefetch=0,
            grid=(grid,),
            in_specs=[pl.BlockSpec((r, 128), lambda i: (i, 0)),             # pipelined logits rows
                      pl.BlockSpec((r, tpr), lambda i: (i, 0))],            # packed targets
            out_specs=pl.BlockSpec((8, 128), lambda i: (i, 0))),            # lane-dense partials
        compiler_params=pltpu.CompilerParams(
            dimension_semantics=("parallel",),
            vmem_limit_bytes=vmem_limit),
    )(logits_p, targets_p)
    part = raw.reshape(grid, 8, 128)
    return jnp.sum(part[:, 0, 0]), jnp.sum(part[:, 0, 1])


# --------------------- NER: generic class-last fallback path -------------------------

def _make_ner_unpacked_kernel(*, n_tokens, block_tokens, c_ner, label_smoothing, ignore_index):
    inv_c = 1.0 / float(c_ner)

    def kernel(z_ref, t_ref, out_ref):
        pid = pl.program_id(0)
        z = z_ref[...].astype(jnp.float32)                                  # (T, C)
        tgt = t_ref[...]                                                    # (T, 1) int32
        t_rows = z.shape[0]

        m = jnp.max(z, axis=-1, keepdims=True)
        sum_exp = jnp.sum(jnp.exp(z - m), axis=-1, keepdims=True)
        lse = m + jnp.log(sum_exp)
        z_sum = jnp.sum(z, axis=-1, keepdims=True)
        cls = lax.broadcasted_iota(jnp.int32, z.shape, 1)
        z_t = jnp.sum(jnp.where(cls == tgt, z, 0.0), axis=-1, keepdims=True)
        per_tok = lse - (1.0 - label_smoothing) * z_t - (label_smoothing * inv_c) * z_sum

        row = pid * block_tokens + lax.broadcasted_iota(jnp.int32, (t_rows, 1), 0)
        valid = (tgt != ignore_index) & (row < n_tokens)
        ner_sum = jnp.sum(jnp.where(valid, per_tok, 0.0))
        valid_cnt = jnp.sum(valid.astype(jnp.float32))

        l8 = lax.broadcasted_iota(jnp.int32, (8, 128), 1)
        s8 = lax.broadcasted_iota(jnp.int32, (8, 128), 0)
        first = s8 == 0
        out_ref[...] = jnp.where(first & (l8 == 0), ner_sum,
                                 jnp.where(first & (l8 == 1), valid_cnt, 0.0))
    return kernel


def _ner_ce_unpacked(ner_logits_2d, ner_target_flat, n_tokens, c_ner, block_tokens=None):
    targets = ner_target_flat.reshape(n_tokens, 1).astype(jnp.int32)
    itemsize = jnp.dtype(ner_logits_2d.dtype).itemsize
    sub_mult = 8 if itemsize >= 4 else (16 if itemsize == 2 else 32)
    padded_c = _round_up(c_ner, 128)
    per_row_bytes = 2 * padded_c * itemsize + 2 * 128 * 4 + 8 * padded_c * 4
    if block_tokens is None:
        t = max(sub_mult, (1 << 20) // max(1, c_ner * itemsize))
        t = min(t, max(sub_mult, (26 << 20) // per_row_bytes))
    else:
        t = block_tokens
    if n_tokens > sub_mult:
        t = min(t, _round_up(pl.cdiv(n_tokens, 2), sub_mult))
    t = max(sub_mult, _round_down(t, sub_mult))
    grid = pl.cdiv(n_tokens, t)
    if grid <= 1:
        t = n_tokens
        grid = 1
    vmem_limit = int(min(40 << 20, max(16 << 20, int(1.3 * t * per_row_bytes))))

    kernel = _make_ner_unpacked_kernel(
        n_tokens=n_tokens, block_tokens=t, c_ner=c_ner,
        label_smoothing=LABEL_SMOOTHING, ignore_index=IGNORE_INDEX)
    raw = pl.pallas_call(
        kernel,
        out_shape=jax.ShapeDtypeStruct((grid * 8, 128), jnp.float32),
        grid_spec=pltpu.PrefetchScalarGridSpec(
            num_scalar_prefetch=0,
            grid=(grid,),
            in_specs=[pl.BlockSpec((t, c_ner), lambda i: (i, 0)),
                      pl.BlockSpec((t, 1), lambda i: (i, 0))],
            out_specs=pl.BlockSpec((8, 128), lambda i: (i, 0))),
        compiler_params=pltpu.CompilerParams(
            dimension_semantics=("parallel",),
            vmem_limit_bytes=vmem_limit),
    )(ner_logits_2d, targets)
    part = raw.reshape(grid, 8, 128)
    return jnp.sum(part[:, 0, 0]), jnp.sum(part[:, 0, 1])


# ------------------------------------ public API -------------------------------------

def ic_ner_loss(alpha, ic_logits, ic_target, ner_logits, ner_target,
                *, ner_block_rows=None, ner_block_tokens=None):
    """Pallas-TPU IC_NER_Loss forward.  Returns {'IC','NER','summary'} as 0-d f32."""
    b_ner, seq, c_ner = ner_logits.shape
    n_tokens = b_ner * seq
    ner_logits_2d = ner_logits.reshape(n_tokens, c_ner)
    ner_target_flat = ner_target.reshape(n_tokens)

    pow2 = (c_ner & (c_ner - 1)) == 0
    packed_ok = pow2 and 8 <= c_ner <= 64 and (n_tokens % (128 // c_ner)) == 0
    if packed_ok:
        ner_sum, valid_cnt = _ner_ce_packed(
            ner_logits_2d, ner_target_flat, n_tokens, c_ner, block_rows=ner_block_rows)
    else:
        ner_sum, valid_cnt = _ner_ce_unpacked(
            ner_logits_2d, ner_target_flat, n_tokens, c_ner, block_tokens=ner_block_tokens)
    # 0/0 = NaN if every token is ignore_index (matches PyTorch).
    ner_loss = ner_sum / valid_cnt

    ic_loss = _ic_focal_loss(ic_logits, ic_target)

    a = jax.nn.sigmoid(jnp.reshape(alpha, ()).astype(jnp.float32))
    summary = a * ic_loss + (1.0 - a) * ner_loss
    return {"IC": ic_loss, "NER": ner_loss, "summary": summary}


# -------------------------------- pure-JAX reference ----------------------------------

def _reference(alpha, ic_logits, ic_target, ner_logits, ner_target):
    ic_logits = ic_logits.astype(jnp.float32)
    ner_logits = ner_logits.astype(jnp.float32)
    if ic_target.ndim < ic_logits.ndim:
        t = jax.nn.one_hot(ic_target, ic_logits.shape[-1], dtype=jnp.float32)
    else:
        t = ic_target.astype(jnp.float32)
    log_sig = jax.nn.log_sigmoid(ic_logits)
    soft = jax.nn.sigmoid(ic_logits) + EPS_FOCAL
    focal = -t * (1.0 - soft) ** GAMMA * log_sig
    ic = jnp.mean(jnp.sum(focal, axis=-1))

    logp = jax.nn.log_softmax(ner_logits, axis=-1)
    valid = ner_target != IGNORE_INDEX
    safe_t = jnp.where(valid, ner_target, 0)
    nll = -jnp.take_along_axis(logp, safe_t[..., None], axis=-1)[..., 0]
    smooth = -jnp.mean(logp, axis=-1)
    per = (1.0 - LABEL_SMOOTHING) * nll + LABEL_SMOOTHING * smooth
    per = jnp.where(valid, per, 0.0)
    ner = jnp.sum(per) / jnp.sum(valid)

    a = jax.nn.sigmoid(jnp.reshape(alpha, ()).astype(jnp.float32))
    return ic, ner, a * ic + (1.0 - a) * ner


if __name__ == "__main__":
    key = jax.random.PRNGKey(0)
    ks = jax.random.split(key, 12)

    def check(out, ref, atol, rtol, name):
        for k, r in zip(("IC", "NER", "summary"), ref):
            assert jnp.allclose(out[k], r, atol=atol, rtol=rtol), (
                f"{name}:{k} kernel={out[k]} ref={r}")

    # case 1: packed fast path, f32, forced 2-step grid with row overhang + ignore_index
    B, C_IC, S, C_NER = 2, 8, 36, 16
    alpha = jnp.zeros((1,), jnp.float32)                       # nn.Parameter(torch.zeros(1))
    ic_logits = jax.random.normal(ks[0], (B, C_IC), jnp.float32)
    ic_target = jax.random.randint(ks[1], (B,), 0, C_IC)       # index labels -> in-kernel one-hot
    ner_logits = jax.random.normal(ks[2], (B, S, C_NER), jnp.float32)
    ner_target = jax.random.randint(ks[3], (B, S), 0, C_NER)
    ner_target = ner_target.at[0, 0].set(IGNORE_INDEX).at[1, 7].set(IGNORE_INDEX)
    out = ic_ner_loss(alpha, ic_logits, ic_target, ner_logits, ner_target, ner_block_rows=8)
    jax.block_until_ready(out)
    check(out, _reference(alpha, ic_logits, ic_target, ner_logits, ner_target),
          1e-4, 1e-4, "case1")

    # case 2: packed path, bf16 logits, single full block, dense one-hot IC target
    B2, C_IC2, S2, C_NER2 = 4, 5, 8, 16
    alpha2 = jnp.asarray([0.3], jnp.float32)
    ic_logits2 = jax.random.normal(ks[4], (B2, C_IC2), jnp.float32).astype(jnp.bfloat16)
    ic_idx2 = jax.random.randint(ks[5], (B2,), 0, C_IC2)
    ic_target2 = jax.nn.one_hot(ic_idx2, C_IC2, dtype=jnp.float32)
    ner_logits2 = jax.random.normal(ks[6], (B2, S2, C_NER2), jnp.float32).astype(jnp.bfloat16)
    ner_target2 = jax.random.randint(ks[7], (B2, S2), 0, C_NER2)
    out2 = ic_ner_loss(alpha2, ic_logits2, ic_target2, ner_logits2, ner_target2)
    jax.block_until_ready(out2)
    check(out2, _reference(alpha2, ic_logits2, ic_target2, ner_logits2, ner_target2),
          1e-3, 1e-3, "case2")

    # case 3: fallback class-last path (c_ner not a power of two), bf16, uneven 2-step grid
    B3, C_IC3, S3, C_NER3 = 3, 6, 10, 10
    alpha3 = jnp.asarray([-0.7], jnp.float32)
    ic_logits3 = jax.random.normal(ks[8], (B3, C_IC3), jnp.float32)
    ic_target3 = jax.random.randint(ks[9], (B3,), 0, C_IC3)
    ner_logits3 = jax.random.normal(ks[10], (B3, S3, C_NER3), jnp.float32).astype(jnp.bfloat16)
    ner_target3 = jax.random.randint(ks[11], (B3, S3), 0, C_NER3)
    ner_target3 = ner_target3.at[1, 3].set(IGNORE_INDEX)
    out3 = ic_ner_loss(alpha3, ic_logits3, ic_target3, ner_logits3, ner_target3,
                       ner_block_tokens=16)
    jax.block_until_ready(out3)
    check(out3, _reference(alpha3, ic_logits3, ic_target3, ner_logits3, ner_target3),
          1e-3, 1e-3, "case3")

    print("KERNEL_OK")
</pallas_src>

<mosaic_0001>
module attributes {stable_mosaic.version = 11 : i64} {
  func.func @kernel(%arg0: i32, %arg1: memref<8x128xf32, #tpu.memory_space<vmem>>, %arg2: memref<8x8xi32, #tpu.memory_space<vmem>>, %arg3: memref<8x128xf32, #tpu.memory_space<vmem>>) attributes {dimension_semantics = [#tpu.dimension_semantics<parallel>], iteration_bounds = array<i64: 2>, scalar_prefetch = 0 : i64, scratch_operands = 0 : i64, tpu.core_type = #tpu.core_type<tc>, window_params = [{transform_indices = @transform_0, window_bounds = array<i64: 8, 128>}, {transform_indices = @transform_1, window_bounds = array<i64: 8, 8>}, {transform_indices = @transform_2, window_bounds = array<i64: 8, 128>}]} {
    %c0 = arith.constant 0 : index
    %c0_0 = arith.constant 0 : index
    %0 = vector.load %arg1[%c0, %c0_0] : memref<8x128xf32, #tpu.memory_space<vmem>>, vector<8x128xf32>
    %c0_1 = arith.constant 0 : index
    %c0_2 = arith.constant 0 : index
    %1 = vector.load %arg2[%c0_1, %c0_2] : memref<8x8xi32, #tpu.memory_space<vmem>>, vector<8x8xi32>
    %2 = tpu.iota {dimensions = array<i32: 1>} : vector<8x128xi32>
    %c15_i32 = arith.constant 15 : i32
    %3 = vector.broadcast %c15_i32 : i32 to vector<8x128xi32>
    %4 = arith.andi %2, %3 : vector<8x128xi32>
    %c4_i32 = arith.constant 4 : i32
    %5 = vector.broadcast %c4_i32 : i32 to vector<8x128xi32>
    %6 = arith.shrsi %2, %5 : vector<8x128xi32>
    %c8_i32 = arith.constant 8 : i32
    %7 = arith.muli %arg0, %c8_i32 : i32
    %8 = tpu.iota {dimensions = array<i32: 0>} : vector<8x128xi32>
    %9 = vector.broadcast %7 : i32 to vector<8x128xi32>
    %10 = arith.addi %9, %8 : vector<8x128xi32>
    %c9_i32 = arith.constant 9 : i32
    %11 = vector.broadcast %c9_i32 : i32 to vector<8x128xi32>
    %12 = arith.cmpi slt, %10, %11 : vector<8x128xi32>
    %c-100_i32 = arith.constant -100 : i32
    %13 = vector.broadcast %c-100_i32 : i32 to vector<8x128xi32>
    %cst = arith.constant 0.000000e+00 : f32
    %14 = vector.broadcast %cst : f32 to vector<8x128xf32>
    %c0_i32 = arith.constant 0 : i32
    %15 = vector.broadcast %c0_i32 : i32 to vector<8x128xi32>
    %16 = arith.cmpi eq, %6, %15 : vector<8x128xi32>
    %17 = vector.extract_strided_slice %1 {offsets = [0, 0], sizes = [8, 1], strides = [1, 1]} : vector<8x8xi32> to vector<8x1xi32>
    %18 = vector.shape_cast %17 : vector<8x1xi32> to vector<8x1xi32>
    %19 = vector.broadcast %18 : vector<8x1xi32> to vector<8x128xi32>
    %20 = arith.select %16, %19, %13 : vector<8x128xi1>, vector<8x128xi32>
    %cst_3 = arith.constant 0xFF800000 : f32
    %21 = vector.broadcast %cst_3 : f32 to vector<8x128xf32>
    %22 = arith.select %16, %0, %21 : vector<8x128xi1>, vector<8x128xf32>
    %cst_4 = arith.constant dense<0xFF800000> : vector<8xf32>
    %23 = vector.multi_reduction <maximumf>, %22, %cst_4 [1] : vector<8x128xf32> to vector<8xf32>
    %24 = vector.shape_cast %23 : vector<8xf32> to vector<8x1xf32>
    %25 = vector.shape_cast %24 : vector<8x1xf32> to vector<8x1xf32>
    %26 = vector.broadcast %25 : vector<8x1xf32> to vector<8x128xf32>
    %27 = arith.select %16, %26, %14 : vector<8x128xi1>, vector<8x128xf32>
    %c1_i32 = arith.constant 1 : i32
    %28 = vector.broadcast %c1_i32 : i32 to vector<8x128xi32>
    %29 = arith.cmpi eq, %6, %28 : vector<8x128xi32>
    %30 = vector.extract_strided_slice %1 {offsets = [0, 1], sizes = [8, 1], strides = [1, 1]} : vector<8x8xi32> to vector<8x1xi32>
    %31 = vector.shape_cast %30 : vector<8x1xi32> to vector<8x1xi32>
    %32 = vector.broadcast %31 : vector<8x1xi32> to vector<8x128xi32>
    %33 = arith.select %29, %32, %20 : vector<8x128xi1>, vector<8x128xi32>
    %cst_5 = arith.constant 0xFF800000 : f32
    %34 = vector.broadcast %cst_5 : f32 to vector<8x128xf32>
    %35 = arith.select %29, %0, %34 : vector<8x128xi1>, vector<8x128xf32>
    %cst_6 = arith.constant dense<0xFF800000> : vector<8xf32>
    %36 = vector.multi_reduction <maximumf>, %35, %cst_6 [1] : vector<8x128xf32> to vector<8xf32>
    %37 = vector.shape_cast %36 : vector<8xf32> to vector<8x1xf32>
    %38 = vector.shape_cast %37 : vector<8x1xf32> to vector<8x1xf32>
    %39 = vector.broadcast %38 : vector<8x1xf32> to vector<8x128xf32>
    %40 = arith.select %29, %39, %27 : vector<8x128xi1>, vector<8x128xf32>
    %c2_i32 = arith.constant 2 : i32
    %41 = vector.broadcast %c2_i32 : i32 to vector<8x128xi32>
    %42 = arith.cmpi eq, %6, %41 : vector<8x128xi32>
    %43 = vector.extract_strided_slice %1 {offsets = [0, 2], sizes = [8, 1], strides = [1, 1]} : vector<8x8xi32> to vector<8x1xi32>
    %44 = vector.shape_cast %43 : vector<8x1xi32> to vector<8x1xi32>
    %45 = vector.broadcast %44 : vector<8x1xi32> to vector<8x128xi32>
    %46 = arith.select %42, %45, %33 : vector<8x128xi1>, vector<8x128xi32>
    %cst_7 = arith.constant 0xFF800000 : f32
    %47 = vector.broadcast %cst_7 : f32 to vector<8x128xf32>
    %48 = arith.select %42, %0, %47 : vector<8x128xi1>, vector<8x128xf32>
    %cst_8 = arith.constant dense<0xFF800000> : vector<8xf32>
    %49 = vector.multi_reduction <maximumf>, %48, %cst_8 [1] : vector<8x128xf32> to vector<8xf32>
    %50 = vector.shape_cast %49 : vector<8xf32> to vector<8x1xf32>
    %51 = vector.shape_cast %50 : vector<8x1xf32> to vector<8x1xf32>
    %52 = vector.broadcast %51 : vector<8x1xf32> to vector<8x128xf32>
    %53 = arith.select %42, %52, %40 : vector<8x128xi1>, vector<8x128xf32>
    %c3_i32 = arith.constant 3 : i32
    %54 = vector.broadcast %c3_i32 : i32 to vector<8x128xi32>
    %55 = arith.cmpi eq, %6, %54 : vector<8x128xi32>
    %56 = vector.extract_strided_slice %1 {offsets = [0, 3], sizes = [8, 1], strides = [1, 1]} : vector<8x8xi32> to vector<8x1xi32>
    %57 = vector.shape_cast %56 : vector<8x1xi32> to vector<8x1xi32>
    %58 = vector.broadcast %57 : vector<8x1xi32> to vector<8x128xi32>
    %59 = arith.select %55, %58, %46 : vector<8x128xi1>, vector<8x128xi32>
    %cst_9 = arith.constant 0xFF800000 : f32
    %60 = vector.broadcast %cst_9 : f32 to vector<8x128xf32>
    %61 = arith.select %55, %0, %60 : vector<8x128xi1>, vector<8x128xf32>
    %cst_10 = arith.constant dense<0xFF800000> : vector<8xf32>
    %62 = vector.multi_reduction <maximumf>, %61, %cst_10 [1] : vector<8x128xf32> to vector<8xf32>
    %63 = vector.shape_cast %62 : vector<8xf32> to vector<8x1xf32>
    %64 = vector.shape_cast %63 : vector<8x1xf32> to vector<8x1xf32>
    %65 = vector.broadcast %64 : vector<8x1xf32> to vector<8x128xf32>
    %66 = arith.select %55, %65, %53 : vector<8x128xi1>, vector<8x128xf32>
    %c4_i32_11 = arith.constant 4 : i32
    %67 = vector.broadcast %c4_i32_11 : i32 to vector<8x128xi32>
    %68 = arith.cmpi eq, %6, %67 : vector<8x128xi32>
    %69 = vector.extract_strided_slice %1 {offsets = [0, 4], sizes = [8, 1], strides = [1, 1]} : vector<8x8xi32> to vector<8x1xi32>
    %70 = vector.shape_cast %69 : vector<8x1xi32> to vector<8x1xi32>
    %71 = vector.broadcast %70 : vector<8x1xi32> to vector<8x128xi32>
    %72 = arith.select %68, %71, %59 : vector<8x128xi1>, vector<8x128xi32>
    %cst_12 = arith.constant 0xFF800000 : f32
    %73 = vector.broadcast %cst_12 : f32 to vector<8x128xf32>
    %74 = arith.select %68, %0, %73 : vector<8x128xi1>, vector<8x128xf32>
    %cst_13 = arith.constant dense<0xFF800000> : vector<8xf32>
    %75 = vector.multi_reduction <maximumf>, %74, %cst_13 [1] : vector<8x128xf32> to vector<8xf32>
    %76 = vector.shape_cast %75 : vector<8xf32> to vector<8x1xf32>
    %77 = vector.shape_cast %76 : vector<8x1xf32> to vector<8x1xf32>
    %78 = vector.broadcast %77 : vector<8x1xf32> to vector<8x128xf32>
    %79 = arith.select %68, %78, %66 : vector<8x128xi1>, vector<8x128xf32>
    %c5_i32 = arith.constant 5 : i32
    %80 = vector.broadcast %c5_i32 : i32 to vector<8x128xi32>
    %81 = arith.cmpi eq, %6, %80 : vector<8x128xi32>
    %82 = vector.extract_strided_slice %1 {offsets = [0, 5], sizes = [8, 1], strides = [1, 1]} : vector<8x8xi32> to vector<8x1xi32>
    %83 = vector.shape_cast %82 : vector<8x1xi32> to vector<8x1xi32>
    %84 = vector.broadcast %83 : vector<8x1xi32> to vector<8x128xi32>
    %85 = arith.select %81, %84, %72 : vector<8x128xi1>, vector<8x128xi32>
    %cst_14 = arith.constant 0xFF800000 : f32
    %86 = vector.broadcast %cst_14 : f32 to vector<8x128xf32>
    %87 = arith.select %81, %0, %86 : vector<8x128xi1>, vector<8x128xf32>
    %cst_15 = arith.constant dense<0xFF800000> : vector<8xf32>
    %88 = vector.multi_reduction <maximumf>, %87, %cst_15 [1] : vector<8x128xf32> to vector<8xf32>
    %89 = vector.shape_cast %88 : vector<8xf32> to vector<8x1xf32>
    %90 = vector.shape_cast %89 : vector<8x1xf32> to vector<8x1xf32>
    %91 = vector.broadcast %90 : vector<8x1xf32> to vector<8x128xf32>
    %92 = arith.select %81, %91, %79 : vector<8x128xi1>, vector<8x128xf32>
    %c6_i32 = arith.constant 6 : i32
    %93 = vector.broadcast %c6_i32 : i32 to vector<8x128xi32>
    %94 = arith.cmpi eq, %6, %93 : vector<8x128xi32>
    %95 = vector.extract_strided_slice %1 {offsets = [0, 6], sizes = [8, 1], strides = [1, 1]} : vector<8x8xi32> to vector<8x1xi32>
    %96 = vector.shape_cast %95 : vector<8x1xi32> to vector<8x1xi32>
    %97 = vector.broadcast %96 : vector<8x1xi32> to vector<8x128xi32>
    %98 = arith.select %94, %97, %85 : vector<8x128xi1>, vector<8x128xi32>
    %cst_16 = arith.constant 0xFF800000 : f32
    %99 = vector.broadcast %cst_16 : f32 to vector<8x128xf32>
    %100 = arith.select %94, %0, %99 : vector<8x128xi1>, vector<8x128xf32>
    %cst_17 = arith.constant dense<0xFF800000> : vector<8xf32>
    %101 = vector.multi_reduction <maximumf>, %100, %cst_17 [1] : vector<8x128xf32> to vector<8xf32>
    %102 = vector.shape_cast %101 : vector<8xf32> to vector<8x1xf32>
    %103 = vector.shape_cast %102 : vector<8x1xf32> to vector<8x1xf32>
    %104 = vector.broadcast %103 : vector<8x1xf32> to vector<8x128xf32>
    %105 = arith.select %94, %104, %92 : vector<8x128xi1>, vector<8x128xf32>
    %c7_i32 = arith.constant 7 : i32
    %106 = vector.broadcast %c7_i32 : i32 to vector<8x128xi32>
    %107 = arith.cmpi eq, %6, %106 : vector<8x128xi32>
    %108 = vector.extract_strided_slice %1 {offsets = [0, 7], sizes = [8, 1], strides = [1, 1]} : vector<8x8xi32> to vector<8x1xi32>
    %109 = vector.shape_cast %108 : vector<8x1xi32> to vector<8x1xi32>
    %110 = vector.broadcast %109 : vector<8x1xi32> to vector<8x128xi32>
    %111 = arith.select %107, %110, %98 : vector<8x128xi1>, vector<8x128xi32>
    %cst_18 = arith.constant 0xFF800000 : f32
    %112 = vector.broadcast %cst_18 : f32 to vector<8x128xf32>
    %113 = arith.select %107, %0, %112 : vector<8x128xi1>, vector<8x128xf32>
    %cst_19 = arith.constant dense<0xFF800000> : vector<8xf32>
    %114 = vector.multi_reduction <maximumf>, %113, %cst_19 [1] : vector<8x128xf32> to vector<8xf32>
    %115 = vector.shape_cast %114 : vector<8xf32> to vector<8x1xf32>
    %116 = vector.shape_cast %115 : vector<8x1xf32> to vector<8x1xf32>
    %117 = vector.broadcast %116 : vector<8x1xf32> to vector<8x128xf32>
    %118 = arith.select %107, %117, %105 : vector<8x128xi1>, vector<8x128xf32>
    %119 = arith.subf %0, %118 : vector<8x128xf32>
    %120 = math.exp %119 : vector<8x128xf32>
    %cst_20 = arith.constant 0.000000e+00 : f32
    %121 = vector.broadcast %cst_20 : f32 to vector<8x128xf32>
    %c0_i32_21 = arith.constant 0 : i32
    %122 = vector.broadcast %c0_i32_21 : i32 to vector<8x128xi32>
    %123 = arith.cmpi eq, %6, %122 : vector<8x128xi32>
    %cst_22 = arith.constant 0.000000e+00 : f32
    %124 = vector.broadcast %cst_22 : f32 to vector<8x128xf32>
    %125 = arith.select %123, %120, %124 : vector<8x128xi1>, vector<8x128xf32>
    %cst_23 = arith.constant dense<0.000000e+00> : vector<8xf32>
    %126 = vector.multi_reduction <add>, %125, %cst_23 [1] : vector<8x128xf32> to vector<8xf32>
    %127 = vector.shape_cast %126 : vector<8xf32> to vector<8x1xf32>
    %128 = vector.shape_cast %127 : vector<8x1xf32> to vector<8x1xf32>
    %129 = vector.broadcast %128 : vector<8x1xf32> to vector<8x128xf32>
    %130 = arith.select %123, %129, %121 : vector<8x128xi1>, vector<8x128xf32>
    %c1_i32_24 = arith.constant 1 : i32
    %131 = vector.broadcast %c1_i32_24 : i32 to vector<8x128xi32>
    %132 = arith.cmpi eq, %6, %131 : vector<8x128xi32>
    %cst_25 = arith.constant 0.000000e+00 : f32
    %133 = vector.broadcast %cst_25 : f32 to vector<8x128xf32>
    %134 = arith.select %132, %120, %133 : vector<8x128xi1>, vector<8x128xf32>
    %cst_26 = arith.constant dense<0.000000e+00> : vector<8xf32>
    %135 = vector.multi_reduction <add>, %134, %cst_26 [1] : vector<8x128xf32> to vector<8xf32>
    %136 = vector.shape_cast %135 : vector<8xf32> to vector<8x1xf32>
    %137 = vector.shape_cast %136 : vector<8x1xf32> to vector<8x1xf32>
    %138 = vector.broadcast %137 : vector<8x1xf32> to vector<8x128xf32>
    %139 = arith.select %132, %138, %130 : vector<8x128xi1>, vector<8x128xf32>
    %c2_i32_27 = arith.constant 2 : i32
    %140 = vector.broadcast %c2_i32_27 : i32 to vector<8x128xi32>
    %141 = arith.cmpi eq, %6, %140 : vector<8x128xi32>
    %cst_28 = arith.constant 0.000000e+00 : f32
    %142 = vector.broadcast %cst_28 : f32 to vector<8x128xf32>
    %143 = arith.select %141, %120, %142 : vector<8x128xi1>, vector<8x128xf32>
    %cst_29 = arith.constant dense<0.000000e+00> : vector<8xf32>
    %144 = vector.multi_reduction <add>, %143, %cst_29 [1] : vector<8x128xf32> to vector<8xf32>
    %145 = vector.shape_cast %144 : vector<8xf32> to vector<8x1xf32>
    %146 = vector.shape_cast %145 : vector<8x1xf32> to vector<8x1xf32>
    %147 = vector.broadcast %146 : vector<8x1xf32> to vector<8x128xf32>
    %148 = arith.select %141, %147, %139 : vector<8x128xi1>, vector<8x128xf32>
    %c3_i32_30 = arith.constant 3 : i32
    %149 = vector.broadcast %c3_i32_30 : i32 to vector<8x128xi32>
    %150 = arith.cmpi eq, %6, %149 : vector<8x128xi32>
    %cst_31 = arith.constant 0.000000e+00 : f32
    %151 = vector.broadcast %cst_31 : f32 to vector<8x128xf32>
    %152 = arith.select %150, %120, %151 : vector<8x128xi1>, vector<8x128xf32>
    %cst_32 = arith.constant dense<0.000000e+00> : vector<8xf32>
    %153 = vector.multi_reduction <add>, %152, %cst_32 [1] : vector<8x128xf32> to vector<8xf32>
    %154 = vector.shape_cast %153 : vector<8xf32> to vector<8x1xf32>
    %155 = vector.shape_cast %154 : vector<8x1xf32> to vector<8x1xf32>
    %156 = vector.broadcast %155 : vector<8x1xf32> to vector<8x128xf32>
    %157 = arith.select %150, %156, %148 : vector<8x128xi1>, vector<8x128xf32>
    %c4_i32_33 = arith.constant 4 : i32
    %158 = vector.broadcast %c4_i32_33 : i32 to vector<8x128xi32>
    %159 = arith.cmpi eq, %6, %158 : vector<8x128xi32>
    %cst_34 = arith.constant 0.000000e+00 : f32
    %160 = vector.broadcast %cst_34 : f32 to vector<8x128xf32>
    %161 = arith.select %159, %120, %160 : vector<8x128xi1>, vector<8x128xf32>
    %cst_35 = arith.constant dense<0.000000e+00> : vector<8xf32>
    %162 = vector.multi_reduction <add>, %161, %cst_35 [1] : vector<8x128xf32> to vector<8xf32>
    %163 = vector.shape_cast %162 : vector<8xf32> to vector<8x1xf32>
    %164 = vector.shape_cast %163 : vector<8x1xf32> to vector<8x1xf32>
    %165 = vector.broadcast %164 : vector<8x1xf32> to vector<8x128xf32>
    %166 = arith.select %159, %165, %157 : vector<8x128xi1>, vector<8x128xf32>
    %c5_i32_36 = arith.constant 5 : i32
    %167 = vector.broadcast %c5_i32_36 : i32 to vector<8x128xi32>
    %168 = arith.cmpi eq, %6, %167 : vector<8x128xi32>
    %cst_37 = arith.constant 0.000000e+00 : f32
    %169 = vector.broadcast %cst_37 : f32 to vector<8x128xf32>
    %170 = arith.select %168, %120, %169 : vector<8x128xi1>, vector<8x128xf32>
    %cst_38 = arith.constant dense<0.000000e+00> : vector<8xf32>
    %171 = vector.multi_reduction <add>, %170, %cst_38 [1] : vector<8x128xf32> to vector<8xf32>
    %172 = vector.shape_cast %171 : vector<8xf32> to vector<8x1xf32>
    %173 = vector.shape_cast %172 : vector<8x1xf32> to vector<8x1xf32>
    %174 = vector.broadcast %173 : vector<8x1xf32> to vector<8x128xf32>
    %175 = arith.select %168, %174, %166 : vector<8x128xi1>, vector<8x128xf32>
    %c6_i32_39 = arith.constant 6 : i32
    %176 = vector.broadcast %c6_i32_39 : i32 to vector<8x128xi32>
    %177 = arith.cmpi eq, %6, %176 : vector<8x128xi32>
    %cst_40 = arith.constant 0.000000e+00 : f32
    %178 = vector.broadcast %cst_40 : f32 to vector<8x128xf32>
    %179 = arith.select %177, %120, %178 : vector<8x128xi1>, vector<8x128xf32>
    %cst_41 = arith.constant dense<0.000000e+00> : vector<8xf32>
    %180 = vector.multi_reduction <add>, %179, %cst_41 [1] : vector<8x128xf32> to vector<8xf32>
    %181 = vector.shape_cast %180 : vector<8xf32> to vector<8x1xf32>
    %182 = vector.shape_cast %181 : vector<8x1xf32> to vector<8x1xf32>
    %183 = vector.broadcast %182 : vector<8x1xf32> to vector<8x128xf32>
    %184 = arith.select %177, %183, %175 : vector<8x128xi1>, vector<8x128xf32>
    %c7_i32_42 = arith.constant 7 : i32
    %185 = vector.broadcast %c7_i32_42 : i32 to vector<8x128xi32>
    %186 = arith.cmpi eq, %6, %185 : vector<8x128xi32>
    %cst_43 = arith.constant 0.000000e+00 : f32
    %187 = vector.broadcast %cst_43 : f32 to vector<8x128xf32>
    %188 = arith.select %186, %120, %187 : vector<8x128xi1>, vector<8x128xf32>
    %cst_44 = arith.constant dense<0.000000e+00> : vector<8xf32>
    %189 = vector.multi_reduction <add>, %188, %cst_44 [1] : vector<8x128xf32> to vector<8xf32>
    %190 = vector.shape_cast %189 : vector<8xf32> to vector<8x1xf32>
    %191 = vector.shape_cast %190 : vector<8x1xf32> to vector<8x1xf32>
    %192 = vector.broadcast %191 : vector<8x1xf32> to vector<8x128xf32>
    %193 = arith.select %186, %192, %184 : vector<8x128xi1>, vector<8x128xf32>
    %194 = math.log %193 : vector<8x128xf32>
    %195 = arith.addf %118, %194 : vector<8x128xf32>
    %c-100_i32_45 = arith.constant -100 : i32
    %196 = vector.broadcast %c-100_i32_45 : i32 to vector<8x128xi32>
    %197 = arith.cmpi ne, %111, %196 : vector<8x128xi32>
    %198 = arith.andi %197, %12 : vector<8x128xi1>
    %199 = arith.cmpi eq, %4, %111 : vector<8x128xi32>
    %200 = arith.andi %198, %199 : vector<8x128xi1>
    %c0_i32_46 = arith.constant 0 : i32
    %201 = vector.broadcast %c0_i32_46 : i32 to vector<8x128xi32>
    %202 = arith.cmpi eq, %4, %201 : vector<8x128xi32>
    %203 = arith.andi %202, %198 : vector<8x128xi1>
    %cst_47 = arith.constant 0.000000e+00 : f32
    %204 = vector.broadcast %cst_47 : f32 to vector<8x128xf32>
    %205 = arith.select %203, %195, %204 : vector<8x128xi1>, vector<8x128xf32>
    %cst_48 = arith.constant 0.000000e+00 : f32
    %206 = vector.broadcast %cst_48 : f32 to vector<8x128xf32>
    %207 = arith.select %200, %0, %206 : vector<8x128xi1>, vector<8x128xf32>
    %cst_49 = arith.constant 0.899999976 : f32
    %208 = vector.broadcast %cst_49 : f32 to vector<8x128xf32>
    %209 = arith.mulf %208, %207 : vector<8x128xf32>
    %210 = arith.subf %205, %209 : vector<8x128xf32>
    %cst_50 = arith.constant 0.000000e+00 : f32
    %211 = vector.broadcast %cst_50 : f32 to vector<8x128xf32>
    %212 = arith.select %198, %0, %211 : vector<8x128xi1>, vector<8x128xf32>
    %cst_51 = arith.constant 6.250000e-03 : f32
    %213 = vector.broadcast %cst_51 : f32 to vector<8x128xf32>
    %214 = arith.mulf %213, %212 : vector<8x128xf32>
    %215 = arith.subf %210, %214 : vector<8x128xf32>
    %216 = vector.shape_cast %215 : vector<8x128xf32> to vector<1x8x128xf32>
    %cst_52 = arith.constant dense<0.000000e+00> : vector<1xf32>
    %217 = vector.multi_reduction <add>, %216, %cst_52 [1, 2] : vector<1x8x128xf32> to vector<1xf32>
    %218 = vector.shape_cast %217 : vector<1xf32> to vector<1x1x1xf32>
    %219 = vector.extract %218[0, 0, 0] : f32 from vector<1x1x1xf32>
    %220 = arith.andi %202, %198 : vector<8x128xi1>
    %cst_53 = arith.constant 1.000000e+00 : f32
    %cst_54 = arith.constant 0.000000e+00 : f32
    %221 = vector.broadcast %cst_53 : f32 to vector<8x128xf32>
    %222 = vector.broadcast %cst_54 : f32 to vector<8x128xf32>
    %223 = arith.select %220, %221, %222 : vector<8x128xi1>, vector<8x128xf32>
    %224 = vector.shape_cast %223 : vector<8x128xf32> to vector<1x8x128xf32>
    %cst_55 = arith.constant dense<0.000000e+00> : vector<1xf32>
    %225 = vector.multi_reduction <add>, %224, %cst_55 [1, 2] : vector<1x8x128xf32> to vector<1xf32>
    %226 = vector.shape_cast %225 : vector<1xf32> to vector<1x1x1xf32>
    %227 = vector.extract %226[0, 0, 0] : f32 from vector<1x1x1xf32>
    %228 = tpu.iota {dimensions = array<i32: 1>} : vector<8x128xi32>
    %229 = tpu.iota {dimensions = array<i32: 0>} : vector<8x128xi32>
    %c0_i32_56 = arith.constant 0 : i32
    %230 = vector.broadcast %c0_i32_56 : i32 to vector<8x128xi32>
    %231 = arith.cmpi eq, %229, %230 : vector<8x128xi32>
    %c0_i32_57 = arith.constant 0 : i32
    %232 = vector.broadcast %c0_i32_57 : i32 to vector<8x128xi32>
    %233 = arith.cmpi eq, %228, %232 : vector<8x128xi32>
    %234 = arith.andi %231, %233 : vector<8x128xi1>
    %c1_i32_58 = arith.constant 1 : i32
    %235 = vector.broadcast %c1_i32_58 : i32 to vector<8x128xi32>
    %236 = arith.cmpi eq, %228, %235 : vector<8x128xi32>
    %237 = arith.andi %231, %236 : vector<8x128xi1>
    %cst_59 = arith.constant 0.000000e+00 : f32
    %238 = vector.broadcast %227 : f32 to vector<8x128xf32>
    %239 = vector.broadcast %cst_59 : f32 to vector<8x128xf32>
    %240 = arith.select %237, %238, %239 : vector<8x128xi1>, vector<8x128xf32>
    %241 = vector.broadcast %219 : f32 to vector<8x128xf32>
    %242 = arith.select %234, %241, %240 : vector<8x128xi1>, vector<8x128xf32>
    %c0_60 = arith.constant 0 : index
    %c0_61 = arith.constant 0 : index
    %243 = vector.load %arg3[%c0_60, %c0_61] : memref<8x128xf32, #tpu.memory_space<vmem>>, vector<8x128xf32>
    tpu.vector_store %arg3[%c0_60, %c0_61], %242 {strides = array<i32>} : memref<8x128xf32, #tpu.memory_space<vmem>>, vector<8x128xf32>,
    return
  }
  func.func @transform_0(%arg0: i32) -> (i32, i32) {
    %c0_i32 = arith.constant 0 : i32
    %c0_i32_0 = arith.constant 0 : i32
    return %arg0, %c0_i32 : i32, i32
  }
  func.func @transform_1(%arg0: i32) -> (i32, i32) {
    %c0_i32 = arith.constant 0 : i32
    %c0_i32_0 = arith.constant 0 : i32
    return %arg0, %c0_i32 : i32, i32
  }
  func.func @transform_2(%arg0: i32) -> (i32, i32) {
    %c0_i32 = arith.constant 0 : i32
    %c0_i32_0 = arith.constant 0 : i32
    return %arg0, %c0_i32 : i32, i32
  }
}

</mosaic_0001>

<llo_original>
// kernel: tpu_custom_call.1
$region0: #{tpu_custom_call.1}
  #allocation0 [shape = 'u32[]', space=smem, size = 0x4, offset = 0x4, fixed_abs, tag = 'smem constant byte address 0x4 - core index']
  #allocation1 [shape = 'u32[144,128]{1,0:T(1,128)}', space=vmem, size = 0x12000, scoped, tag = 'internal scratch']
  %s0 = inlined_call_operand.vmem [shape: f32[9,128], index: 0, kind: input, shape index: {}]
  %s1 = inlined_call_operand.vmem [shape: s32[9,8], index: 1, kind: input, shape index: {}]
  %s2 = inlined_call_operand.hbm [shape: f32[16,128], index: 2, kind: output, shape index: {}]
  %s3 = sld [smem:[#allocation0]]
  $region41: #{tpu_custom_call.1} parent=0
    _
  %s5 = ssub.s32 1, %s3
  %s6 = scalar_select 0, %s5, %s3
  $region1: #{tpu_custom_call.1} parent=0
    #allocation2 [shape = 'u8[8192]{0}', space=vmem, size = 0x2000, scoped, tag = 'output window, operand 0']
    #allocation3 [shape = 's32[2]{0}', space=sflag, size = 0x8, scoped, tag = 'scoped memory for tpu_custom_call.1']
    %7 = vsyncpa [#allocation3], 0
    %s8 = scalar_lea.sflag [#allocation3], 1
    %9 = vsyncpa %s8, 0
    loop: start=0, step=1, limit=4
    $region2: #{tpu_custom_call.1} parent=1 // loop_pre_header
      _
    $region3: #{tpu_custom_call.1} parent=1 // loop_header
      %s11 = sphi 0, %s15
      %p12 = scmp.ge.s32.totalorder %s11, 4
      %s21 = sphi 0, %s23
      %s24 = sphi 0, %s21
      %s25 = sphi 0, %s24
      %s41 = sphi 0, %s25
      %s47 = sphi 0, %s49
      %s50 = sphi 0, %s47
      %s51 = sphi 0, %s50
      %s67 = sphi 0, %s51
      %s73 = sphi 0, %s75
      %s76 = sphi 0, %s73
      %s77 = sphi 0, %s76
      %s93 = sphi 0, %s77
    $region4: #{tpu_custom_call.1} parent=1 // loop_header_branch
      %14 = sbr.rel (%p12) target = $region8
    $region5: #{tpu_custom_call.1} parent=1 // loop_body
      %s16 = ssub.s32 %s11, 1
      %s17 = ssub.s32 %s11, 2
      %s18 = sadd.s32 %s11, 1
      %s19 = ssub.s32 %s11, %s18
      %p20 = scmp.eq.s32.totalorder %s19, 0
      %s22 = sadd.s32 %s21, 1
      %s23 = scalar_select %p20, %s21, %s22
      %p26 = pneg %p20
      %p27 = scmp.eq.s32.totalorder %s11, 1
      %p28 = por %p26, %p27
      %p29 = scmp.ne.s32.totalorder %s21, %s24
      %p30 = scmp.eq.s32.totalorder %s11, 0
      %p31 = por %p29, %p30
      %p32 = scmp.ne.s32.totalorder %s21, %s24
      %p33 = scmp.eq.s32.totalorder %s16, 1
      %p34 = por %p32, %p33
      %p35 = scmp.ne.s32.totalorder %s24, %s25
      %p36 = scmp.eq.s32.totalorder %s16, 0
      %p37 = por %p35, %p36
      %p38 = scmp.ne.s32.totalorder %s24, %s25
      %p39 = scmp.eq.s32.totalorder %s17, 1
      %p40 = por %p38, %p39
      %p42 = scmp.ne.s32.totalorder %s25, %s41
      %p43 = scmp.eq.s32.totalorder %s17, 0
      %p44 = por %p42, %p43
      %s45 = ssub.s32 %s11, %s18
      %p46 = scmp.eq.s32.totalorder %s45, 0
      %s48 = sadd.s32 %s47, 1
      %s49 = scalar_select %p46, %s47, %s48
      %p52 = pneg %p46
      %p53 = scmp.eq.s32.totalorder %s11, 1
      %p54 = por %p52, %p53
      %p55 = scmp.ne.s32.totalorder %s47, %s50
      %p56 = scmp.eq.s32.totalorder %s11, 0
      %p57 = por %p55, %p56
      %p58 = scmp.ne.s32.totalorder %s47, %s50
      %p59 = scmp.eq.s32.totalorder %s16, 1
      %p60 = por %p58, %p59
      %p61 = scmp.ne.s32.totalorder %s50, %s51
      %p62 = scmp.eq.s32.totalorder %s16, 0
      %p63 = por %p61, %p62
      %p64 = scmp.ne.s32.totalorder %s50, %s51
      %p65 = scmp.eq.s32.totalorder %s17, 1
      %p66 = por %p64, %p65
      %p68 = scmp.ne.s32.totalorder %s51, %s67
      %p69 = scmp.eq.s32.totalorder %s17, 0
      %p70 = por %p68, %p69
      %s71 = ssub.s32 %s11, %s18
      %p72 = scmp.eq.s32.totalorder %s71, 0
      %s74 = sadd.s32 %s73, 1
      %s75 = scalar_select %p72, %s73, %s74
      %p78 = pneg %p72
      %p79 = scmp.eq.s32.totalorder %s11, 1
      %p80 = por %p78, %p79
      %p81 = scmp.ne.s32.totalorder %s73, %s76
      %p82 = scmp.eq.s32.totalorder %s11, 0
      %p83 = por %p81, %p82
      %p84 = scmp.ne.s32.totalorder %s73, %s76
      %p85 = scmp.eq.s32.totalorder %s16, 1
      %p86 = por %p84, %p85
      %p87 = scmp.ne.s32.totalorder %s76, %s77
      %p88 = scmp.eq.s32.totalorder %s16, 0
      %p89 = por %p87, %p88
      %p90 = scmp.ne.s32.totalorder %s76, %s77
      %p91 = scmp.eq.s32.totalorder %s17, 1
      %p92 = por %p90, %p91
      %p94 = scmp.ne.s32.totalorder %s77, %s93
      %p95 = scmp.eq.s32.totalorder %s17, 0
      %p96 = por %p94, %p95
      %p97 = scmp.le.s32.totalorder 1, %s11
      %p98 = scmp.lt.s32.totalorder %s11, 3
      %p99 = pnand %p97, %p98
      %p100 = pneg %p99
      // Predicated region
      $region9: #{tpu_custom_call.1} parent=5 // pred_check
        _
      $region10: #{tpu_custom_call.1} parent=5 // pred_check_branch
        %102 = sbr.rel (%p99) target = $region12
      $region11: #{tpu_custom_call.1} parent=5 // pred_region
        %s103 = ssub.s32 %s11, 1
      $region12: #{tpu_custom_call.1} parent=5 // pred_fallthru
        _
      %p104 = scmp.lt.s32.totalorder %s11, 2
      // Predicated region
      $region13: #{tpu_custom_call.1} parent=5 // pred_check
        %p105 = pneg %p104
      $region14: #{tpu_custom_call.1} parent=5 // pred_check_branch
        %107 = sbr.rel (%p105) target = $region16
      $region15: #{tpu_custom_call.1} parent=5 // pred_region
        // Predicated region
        $region17: #{tpu_custom_call.1} parent=15 // pred_check
          %p108 = pneg %p31
        $region18: #{tpu_custom_call.1} parent=15 // pred_check_branch
          %110 = sbr.rel (%p108) target = $region20
        $region19: #{tpu_custom_call.1} parent=15 // pred_region
          %p111 = scmp.lt.s32.totalorder %s11, 1
          %s112 = scalar_select %p111, %s11, 1
          %s113 = smul.addr %s112, 8
          %s114 = scalar_lea.vmem %s0, %s113
        $region20: #{tpu_custom_call.1} parent=15 // pred_fallthru
          _
        // Predicated region
        $region21: #{tpu_custom_call.1} parent=15 // pred_check
          %p115 = pneg %p57
        $region22: #{tpu_custom_call.1} parent=15 // pred_check_branch
          %117 = sbr.rel (%p115) target = $region24
        $region23: #{tpu_custom_call.1} parent=15 // pred_region
          %p118 = scmp.lt.s32.totalorder %s11, 1
          %s119 = scalar_select %p118, %s11, 1
          %s120 = smul.addr %s119, 8
          %s121 = scalar_lea.vmem %s1, %s120
        $region24: #{tpu_custom_call.1} parent=15 // pred_fallthru
          _
      $region16: #{tpu_custom_call.1} parent=5 // pred_fallthru
        _
      %p122 = scmp.le.s32.totalorder 1, %s11
      %p123 = scmp.lt.s32.totalorder %s11, 3
      %p124 = pnand %p122, %p123
      %p125 = pneg %p124
      // Predicated region
      $region25: #{tpu_custom_call.1} parent=5 // pred_check
        _
      $region26: #{tpu_custom_call.1} parent=5 // pred_check_branch
        %127 = sbr.rel (%p124) target = $region28
      $region27: #{tpu_custom_call.1} parent=5 // pred_region
        %s128 = ssub.s32 %s11, 1
        %p129 = scmp.lt.s32.totalorder %s16, 1
        %s130 = scalar_select %p129, %s16, 1
        %s131 = smul.addr %s130, 8
        %s132 = scalar_lea.vmem %s0, %s131
        %p133 = pneg %p37
        %p134 = pneg %p34
        %p135 = scmp.lt.s32.totalorder %s16, 1
        %s136 = scalar_select %p135, %s16, 1
        %s137 = smul.addr %s136, 8
        %s138 = scalar_lea.vmem %s1, %s137
        %p139 = pneg %p63
        %p140 = pneg %p60
        %p141 = pneg %p89
        %p142 = pneg %p86
        %s143 = sand.u32 %s76, 1
        %s144 = scalar_lea.sflag [#allocation3], %s143
        %s145 = sand.u32 %s76, 1
        %s146 = smul.addr %s145, 8
        %s147 = scalar_lea.vmem [#allocation2], %s146
        %p148 = scmp.lt.s32.totalorder %s16, 1
        %s149 = scalar_select %p148, %s16, 1
        %s150 = smul.addr %s149, 8
        %s151 = scalar_lea.vmem %s0, %s150
        %p152 = scmp.lt.s32.totalorder %s16, 1
        %s153 = scalar_select %p152, %s16, 1
        %s154 = smul.addr %s153, 8
        %s155 = scalar_lea.vmem %s1, %s154
        %v156 = vld [vmem:[%s151] sm:$0xff]
        %v157 = vld [vmem:[%s155] sm:$0xff]
        %v158 = vlaneseq
        %v159 = vand.u32 %v158, 127
        %v160 = vand.u32 %v159, 15
        %v161 = vshra.s32 %v159, 4
        %s162 = smul.u32 %s16, 8
        %v163 = vlaneseq
        %v164 = vshrl.u32 %v163, 7
        %v165 = vstv %s162
        %v166 = vadd.s32 %v165, %v164
        %vm167 = vcmp.lt.s32.totalorder %v166, 9
        %vm168 = vcmp.eq.s32.totalorder %v161, 0
        %169 = vset.pattern.permute.xlu0 0
        %170 = vperm.xlu0 %169, %v157
        %v171 = vpop.permute.xlu0 %170
        %v172 = vsel %vm168, %v171, 4294967196
        %v173 = vsel %vm168, %v156, -inf
        %174 = vmax.xlane.f32.xlu0 %v173
        %v175 = vpop.xlane.xlu0 %174
        %v176 = vsel %vm168, %v175, 0.0
        %vm177 = vcmp.eq.s32.totalorder %v161, 1
        %178 = vset.pattern.permute.xlu0 1
        %179 = vperm.xlu0 %178, %v157
        %v180 = vpop.permute.xlu0 %179
        %v181 = vsel %vm177, %v180, %v172
        %v182 = vsel %vm177, %v156, -inf
        %183 = vmax.xlane.f32.xlu0 %v182
        %v184 = vpop.xlane.xlu0 %183
        %v185 = vsel %vm177, %v184, %v176
        %vm186 = vcmp.eq.s32.totalorder %v161, 2
        %187 = vset.pattern.permute.xlu0 2
        %188 = vperm.xlu0 %187, %v157
        %v189 = vpop.permute.xlu0 %188
        %v190 = vsel %vm186, %v189, %v181
        %v191 = vsel %vm186, %v156, -inf
        %192 = vmax.xlane.f32.xlu0 %v191
        %v193 = vpop.xlane.xlu0 %192
        %v194 = vsel %vm186, %v193, %v185
        %vm195 = vcmp.eq.s32.totalorder %v161, 3
        %196 = vset.pattern.permute.xlu0 3
        %197 = vperm.xlu0 %196, %v157
        %v198 = vpop.permute.xlu0 %197
        %v199 = vsel %vm195, %v198, %v190
        %v200 = vsel %vm195, %v156, -inf
        %201 = vmax.xlane.f32.xlu0 %v200
        %v202 = vpop.xlane.xlu0 %201
        %v203 = vsel %vm195, %v202, %v194
        %vm204 = vcmp.eq.s32.totalorder %v161, 4
        %205 = vset.pattern.permute.xlu0 4
        %206 = vperm.xlu0 %205, %v157
        %v207 = vpop.permute.xlu0 %206
        %v208 = vsel %vm204, %v207, %v199
        %v209 = vsel %vm204, %v156, -inf
        %210 = vmax.xlane.f32.xlu0 %v209
        %v211 = vpop.xlane.xlu0 %210
        %v212 = vsel %vm204, %v211, %v203
        %vm213 = vcmp.eq.s32.totalorder %v161, 5
        %214 = vset.pattern.permute.xlu0 5
        %215 = vperm.xlu0 %214, %v157
        %v216 = vpop.permute.xlu0 %215
        %v217 = vsel %vm213, %v216, %v208
        %v218 = vsel %vm213, %v156, -inf
        %219 = vmax.xlane.f32.xlu0 %v218
        %v220 = vpop.xlane.xlu0 %219
        %v221 = vsel %vm213, %v220, %v212
        %vm222 = vcmp.eq.s32.totalorder %v161, 6
        %223 = vset.pattern.permute.xlu0 6
        %224 = vperm.xlu0 %223, %v157
        %v225 = vpop.permute.xlu0 %224
        %v226 = vsel %vm222, %v225, %v217
        %v227 = vsel %vm222, %v156, -inf
        %228 = vmax.xlane.f32.xlu0 %v227
        %v229 = vpop.xlane.xlu0 %228
        %v230 = vsel %vm222, %v229, %v221
        %vm231 = vcmp.eq.s32.totalorder %v161, 7
        %232 = vset.pattern.permute.xlu0 7
        %233 = vperm.xlu0 %232, %v157
        %v234 = vpop.permute.xlu0 %233
        %v235 = vsel %vm231, %v234, %v226
        %v236 = vsel %vm231, %v156, -inf
        %237 = vmax.xlane.f32.xlu0 %v236
        %v238 = vpop.xlane.xlu0 %237
        %v239 = vsel %vm231, %v238, %v230
        %v240 = vsub.f32 %v156, %v239
        %v241 = vmul.f32 %v240, 1.442695
        %v242 = vpow.pop %v241
        %v243 = vsel %vm168, %v242, 0.0
        %244 = vadd.xlane.f32.xlu0 %v243
        %v245 = vpop.xlane.xlu0 %244
        %v246 = vsel %vm168, %v245, 0.0
        %v247 = vsel %vm177, %v242, 0.0
        %248 = vadd.xlane.f32.xlu0 %v247
        %v249 = vpop.xlane.xlu0 %248
        %v250 = vsel %vm177, %v249, %v246
        %v251 = vsel %vm186, %v242, 0.0
        %252 = vadd.xlane.f32.xlu0 %v251
        %v253 = vpop.xlane.xlu0 %252
        %v254 = vsel %vm186, %v253, %v250
        %v255 = vsel %vm195, %v242, 0.0
        %256 = vadd.xlane.f32.xlu0 %v255
        %v257 = vpop.xlane.xlu0 %256
        %v258 = vsel %vm195, %v257, %v254
        %v259 = vsel %vm204, %v242, 0.0
        %260 = vadd.xlane.f32.xlu0 %v259
        %v261 = vpop.xlane.xlu0 %260
        %v262 = vsel %vm204, %v261, %v258
        %v263 = vsel %vm213, %v242, 0.0
        %264 = vadd.xlane.f32.xlu0 %v263
        %v265 = vpop.xlane.xlu0 %264
        %v266 = vsel %vm213, %v265, %v262
        %v267 = vsel %vm222, %v242, 0.0
        %268 = vadd.xlane.f32.xlu0 %v267
        %v269 = vpop.xlane.xlu0 %268
        %v270 = vsel %vm222, %v269, %v266
        %v271 = vsel %vm231, %v242, 0.0
        %272 = vadd.xlane.f32.xlu0 %v271
        %v273 = vpop.xlane.xlu0 %272
        %v274 = vsel %vm231, %v273, %v270
        %v275 = vlog2.pop %v274
        %v276 = vmul.f32 %v275, 0.6931472
        %v277 = vadd.f32 %v239, %v276
        %vm278 = vcmp.ne.s32.totalorder %v235, 4294967196
        %vm279 = vmand %vm278, %vm167
        %vm280 = vcmp.eq.s32.totalorder %v160, %v235
        %vm281 = vmand %vm279, %vm280
        %vm282 = vcmp.eq.s32.totalorder %v160, 0
        %vm283 = vmand %vm282, %vm279
        %v284 = vsel %vm283, %v277, 0.0
        %v285 = vsel %vm281, %v156, 0.0
        %v286 = vmul.f32 %v285, 0.9
        %v287 = vsub.f32 %v284, %v286
        %v288 = vsel %vm279, %v156, 0.0
        %v289 = vmul.f32 %v288, 0.00625
        %v290 = vsub.f32 %v287, %v289
        %291 = vadd.xlane.f32.xlu0 %v290
        %v292 = vpop.xlane.xlu0 %291
        %v293 = vrot.slane %v292, 4
        %v294 = vadd.f32 %v292, %v293
        %v295 = vrot.slane %v294, 2
        %v296 = vadd.f32 %v294, %v295
        %v297 = vrot.slane %v296, 1
        %v298 = vadd.f32 %v296, %v297
        %s299 = vtos %v298
        %v300 = vsel %vm283, 1.0, 0.0
        %301 = vadd.xlane.f32.xlu0 %v300
        %v302 = vpop.xlane.xlu0 %301
        %v303 = vrot.slane %v302, 4
        %v304 = vadd.f32 %v302, %v303
        %v305 = vrot.slane %v304, 2
        %v306 = vadd.f32 %v304, %v305
        %v307 = vrot.slane %v306, 1
        %v308 = vadd.f32 %v306, %v307
        %s309 = vtos %v308
        %vm310 = vcmp.eq.s32.totalorder %v164, 0
        %vm311 = vcmp.eq.s32.totalorder %v159, 0
        %vm312 = vmand %vm310, %vm311
        %vm313 = vcmp.eq.s32.totalorder %v159, 1
        %vm314 = vmand %vm310, %vm313
        %v315 = vstv %s309
        %v316 = vsel %vm314, %v315, 0.0
        %v317 = vstv %s299
        %v318 = vsel %vm312, %v317, %v316
        %319 = vst [vmem:[%s147] sm:$0xff] %v318
        %s320 = sand.u32 %s76, 1
        %s321 = scalar_lea.sflag [#allocation3], %s320
        %s322 = sand.u32 %s76, 1
        %s323 = smul.addr %s322, 8
        %s324 = scalar_lea.vmem [#allocation2], %s323
        // Predicated region
        $region29: #{tpu_custom_call.1} parent=27 // pred_check
          %p325 = pneg %p86
        $region30: #{tpu_custom_call.1} parent=27 // pred_check_branch
          %327 = sbr.rel (%p325) target = $region32
        $region31: #{tpu_custom_call.1} parent=27 // pred_region
          %s329 = ssub.s32 128, 128
          %330 = vsyncadd %s321, %s329
          %s331 = smul.addr %s16, 128
          %s332 = scalar_lea.hbm %s2, %s331
          %s334 = sshll.u32 %s324, 4
          %s335 = int_to_ptr.vmem [resolvable:$true] %s334
          %337 = dma.vmem_to_hbm [thread:$0]  %s335, 128, %s332, %s321
        $region32: #{tpu_custom_call.1} parent=27 // pred_fallthru
          _
      $region28: #{tpu_custom_call.1} parent=5 // pred_fallthru
        _
      %p338 = scmp.le.s32.totalorder 2, %s11
      // Predicated region
      $region33: #{tpu_custom_call.1} parent=5 // pred_check
        %p339 = pneg %p338
      $region34: #{tpu_custom_call.1} parent=5 // pred_check_branch
        %341 = sbr.rel (%p339) target = $region36
      $region35: #{tpu_custom_call.1} parent=5 // pred_region
        %s342 = ssub.s32 %s11, 2
        // Predicated region
        $region37: #{tpu_custom_call.1} parent=35 // pred_check
          %p343 = pneg %p92
        $region38: #{tpu_custom_call.1} parent=35 // pred_check_branch
          %345 = sbr.rel (%p343) target = $region40
        $region39: #{tpu_custom_call.1} parent=35 // pred_region
          %s346 = sand.u32 %s77, 1
          %s347 = scalar_lea.sflag [#allocation3], %s346
          %s348 = sand.u32 %s77, 1
          %s349 = smul.addr %s348, 8
          %s350 = scalar_lea.vmem [#allocation2], %s349
          %351 = dma.done %s347, 128
        $region40: #{tpu_custom_call.1} parent=35 // pred_fallthru
          _
      $region36: #{tpu_custom_call.1} parent=5 // pred_fallthru
        _
    $region6: #{tpu_custom_call.1} parent=1 // loop_footer
      %s15 = sadd.s32 1, %s11
    $region7: #{tpu_custom_call.1} parent=1 // loop_footer_branch
      %10 = sbr.rel target = $region3
    $region8: #{tpu_custom_call.1} parent=1 // loop_exit
      _
    %352 = vsyncpa [#allocation3], 1
    %s353 = scalar_lea.sflag [#allocation3], 1
    %354 = vsyncpa %s353, 1

</llo_original>
